<compile_context>
chip_gen: v5e
topology: v5e:2x2
jax: 0.10.0
libtpu: 0.0.40
codegen_flags: <defaults>
</compile_context>

<pallas_src>
import jax
import jax.numpy as jnp
from jax.experimental import pallas as pl
from jax.experimental.pallas import tpu as pltpu

_LANES = 128
_MAX_BLOCK_ROWS = 2048        # 2048 * 128 * 4B = 1 MiB per f32 block
_PALLAS_MIN_ELEMS = 4096      # below this, XLA fast path (launch-overhead bound)


def _sublane_pack(dtype) -> int:
    """Minimum sublane multiple for a dtype: 8 (f32), 16 (bf16), 32 (int8/fp8)."""
    itemsize = jnp.dtype(dtype).itemsize
    return max(8, (4 // max(itemsize, 1)) * 8)


# ---------------------------------------------------------------------------
# Kernel
# ---------------------------------------------------------------------------
def _make_multistable_kernel(n_roots):
    """Elementwise: o = alpha * prod_i (x - roots[i]).  n_roots is static."""

    def kernel(alpha_ref, roots_ref, x_ref, o_ref):
        # Load in native dtype, accumulate the product in f32.
        x = x_ref[...].astype(jnp.float32)          # (block_rows, 128)
        alpha = alpha_ref[0]                         # f32 scalar from SMEM

        # Fold alpha into the first factor, then reduce with a balanced
        # multiply tree (shorter dependent chain than a serial product).
        # TODO(synk): switch to lax.fori_loop(unroll=True) if n_roots grows
        # beyond ~8 and the static unroll bloats the kernel.
        factors = [alpha * x - alpha * roots_ref[0]]
        for i in range(1, n_roots):
            factors.append(x - roots_ref[i])
        while len(factors) > 1:
            nxt = [factors[j] * factors[j + 1]
                   for j in range(0, len(factors) - 1, 2)]
            if len(factors) % 2:
                nxt.append(factors[-1])
            factors = nxt

        o_ref[...] = factors[0].astype(o_ref.dtype)

    return kernel


# ---------------------------------------------------------------------------
# Wrapper
# ---------------------------------------------------------------------------
def multistable_rhs(x, alpha, roots, *, force_pallas=False,
                    max_block_rows=_MAX_BLOCK_ROWS):
    """Computes alpha * prod_i (x - roots[i]) elementwise, any input shape."""
    orig_shape = x.shape
    dtype = x.dtype

    roots_f32 = jnp.asarray(roots, dtype=jnp.float32).reshape(-1)
    alpha_f32 = jnp.asarray(alpha, dtype=jnp.float32).reshape(())
    n_roots = int(roots_f32.shape[0])

    flat = x.reshape(-1)
    n = int(flat.shape[0])

    if n == 0:
        return jnp.zeros(orig_shape, dtype=dtype)
    if n_roots == 0:
        # Empty product == 1 -> derivative is the constant alpha (degenerate).
        return jnp.full(orig_shape, alpha_f32, dtype=dtype)

    # --- Small-n fast path: let XLA fuse the handful of elementwise ops. ----
    if n < _PALLAS_MIN_ELEMS and not force_pallas:
        xf = flat.astype(jnp.float32)
        prod = alpha_f32 * (xf - roots_f32[0])
        for i in range(1, n_roots):
            prod = prod * (xf - roots_f32[i])
        return prod.astype(dtype).reshape(orig_shape)

    # --- Pallas path: lane-dense (rows, 128) slab, row-blocked grid. --------
    rows = -(-n // _LANES)
    n_lane_padded = rows * _LANES
    if n_lane_padded != n:                           # pad only to lane granularity
        flat = jnp.pad(flat, (0, n_lane_padded - n))
    x2d = flat.reshape(rows, _LANES)

    pack = _sublane_pack(dtype)
    if rows <= max_block_rows:
        # Single block equal to the full array: no (8,128) divisibility needed.
        block_rows = rows
    else:
        block_rows = max(pack, (max_block_rows // pack) * pack)
    grid = (pl.cdiv(rows, block_rows),)              # ragged last block masked

    alpha_smem = alpha_f32.reshape(1)

    out2d = pl.pallas_call(
        _make_multistable_kernel(n_roots),
        out_shape=jax.ShapeDtypeStruct((rows, _LANES), dtype),
        grid=grid,
        in_specs=[
            pl.BlockSpec(memory_space=pltpu.MemorySpace.SMEM),   # alpha (1,) f32
            pl.BlockSpec(memory_space=pltpu.MemorySpace.SMEM),   # roots (n_roots,) f32
            pl.BlockSpec((block_rows, _LANES), lambda i: (i, 0)),
        ],
        out_specs=pl.BlockSpec((block_rows, _LANES), lambda i: (i, 0)),
        compiler_params=pltpu.CompilerParams(
            # Row blocks are independent; on v7x this lets both TensorCores
            # split the batch.  (CORE_PARALLEL is a possible further win there.)
            dimension_semantics=("parallel",),
        ),
    )(alpha_smem, roots_f32, x2d)

    if n_lane_padded != n:
        return out2d.reshape(-1)[:n].reshape(orig_shape)
    return out2d.reshape(orig_shape)


class Learnable1DMultistableSystemPallas:
    """JAX/Pallas equivalent of Learnable1DMultistableSystem.forward (dim == 1)."""

    def __init__(self, roots, alpha_init=-1.0):
        if alpha_init is None:
            alpha_init = -1.0
        self.roots = jnp.asarray(roots, dtype=jnp.float32)
        self.alpha = jnp.asarray(alpha_init, dtype=jnp.float32)
        self.dim = 1
        self.dt = 0.05
        self.time_span = (0.0, 5.0)

    def __call__(self, t, x):
        # `t` is unused, matching the PyTorch forward.
        y = multistable_rhs(x, self.alpha, self.roots)
        dx_dt = y[..., None]                 # torch.stack([y], dim=-1), dim == 1
        if dx_dt.shape[0] == 1:
            dx_dt = jnp.squeeze(dx_dt, axis=0)
        return dx_dt
    # TODO(synk): compute_trajectory / torchsde integration loops are host-side
    # solver drivers, not part of the forward pass, and are not translated.


# ---------------------------------------------------------------------------
# Main
# ---------------------------------------------------------------------------
if __name__ == "__main__":
    key = jax.random.PRNGKey(0)
    k1, k2, k3, k4 = jax.random.split(key, 4)

    roots = [-1.0, 0.0, 1.0]
    alpha_init = -0.5
    system = Learnable1DMultistableSystemPallas(roots, alpha_init=alpha_init)
    t = jnp.float32(0.0)

    def reference(x):
        xf = x.astype(jnp.float32)
        prod = jnp.ones_like(xf)
        for r in roots:
            prod = prod * (xf - r)
        return (alpha_init * prod).astype(x.dtype)

    # 1) Batched ODE-solver shape (batch, state_dim=1): tiny -> fused XLA path.
    x_b = jax.random.normal(k1, (8, 1), dtype=jnp.float32)
    out_b = jax.block_until_ready(system(t, x_b))
    ref_b = reference(x_b)[..., None]
    assert out_b.shape == ref_b.shape
    assert jnp.allclose(out_b, ref_b, atol=1e-6, rtol=1e-6)

    # 2) Single state (dim,) = (1,): exercises the squeeze(0) branch.
    x_s = jax.random.normal(k2, (1,), dtype=jnp.float32)
    out_s = jax.block_until_ready(system(t, x_s))
    ref_s = jnp.squeeze(reference(x_s)[..., None], axis=0)
    assert out_s.shape == ref_s.shape
    assert jnp.allclose(out_s, ref_s, atol=1e-6, rtol=1e-6)

    # 3) Pallas path, ragged lane padding (300 elems -> 3x128 block).
    x_r = jax.random.normal(k3, (300, 1), dtype=jnp.float32)
    out_r = jax.block_until_ready(
        multistable_rhs(x_r, system.alpha, system.roots, force_pallas=True))
    assert out_r.shape == x_r.shape
    assert jnp.allclose(out_r, reference(x_r), atol=1e-6, rtol=1e-6)

    # 4) Pallas path, multi-block grid with ragged handling (small block cap).
    x_g = jax.random.normal(k4, (3000,), dtype=jnp.float32)
    out_g = jax.block_until_ready(
        multistable_rhs(x_g, system.alpha, system.roots,
                        force_pallas=True, max_block_rows=8))
    assert out_g.shape == x_g.shape
    assert jnp.allclose(out_g, reference(x_g), atol=1e-6, rtol=1e-6)

    # 5) bf16 input: product accumulated in f32 inside the kernel, cast on store.
    x_h = jax.random.normal(k1, (256, 1), dtype=jnp.bfloat16)
    out_h = jax.block_until_ready(
        multistable_rhs(x_h, system.alpha, system.roots, force_pallas=True))
    ref_h = reference(x_h)
    assert out_h.dtype == jnp.bfloat16 and out_h.shape == ref_h.shape
    assert jnp.allclose(out_h.astype(jnp.float32), ref_h.astype(jnp.float32),
                        atol=2e-2, rtol=2e-2)

    print("KERNEL_OK")
</pallas_src>

<mosaic_0001>
module attributes {stable_mosaic.version = 11 : i64} {
  func.func @kernel(%arg0: i32, %arg1: memref<1xf32, #tpu.memory_space<smem>>, %arg2: memref<3xf32, #tpu.memory_space<smem>>, %arg3: memref<3x128xf32, #tpu.memory_space<vmem>>, %arg4: memref<3x128xf32, #tpu.memory_space<vmem>>) attributes {dimension_semantics = [#tpu.dimension_semantics<parallel>], iteration_bounds = array<i64: 1>, scalar_prefetch = 0 : i64, scratch_operands = 0 : i64, tpu.core_type = #tpu.core_type<tc>, window_params = [{transform_indices = @transform_0, window_bounds = array<i64: 1>}, {transform_indices = @transform_1, window_bounds = array<i64: 3>}, {transform_indices = @transform_2, window_bounds = array<i64: 3, 128>}, {transform_indices = @transform_3, window_bounds = array<i64: 3, 128>}]} {
    %c0 = arith.constant 0 : index
    %c0_0 = arith.constant 0 : index
    %0 = vector.load %arg3[%c0, %c0_0] : memref<3x128xf32, #tpu.memory_space<vmem>>, vector<3x128xf32>
    %c0_1 = arith.constant 0 : index
    %1 = memref.load %arg1[%c0_1] : memref<1xf32, #tpu.memory_space<smem>>
    %2 = vector.broadcast %1 : f32 to vector<3x128xf32>
    %3 = arith.mulf %2, %0 : vector<3x128xf32>
    %c0_2 = arith.constant 0 : index
    %4 = memref.load %arg2[%c0_2] : memref<3xf32, #tpu.memory_space<smem>>
    %5 = arith.mulf %1, %4 : f32
    %6 = vector.broadcast %5 : f32 to vector<3x128xf32>
    %7 = arith.subf %3, %6 : vector<3x128xf32>
    %c1 = arith.constant 1 : index
    %8 = memref.load %arg2[%c1] : memref<3xf32, #tpu.memory_space<smem>>
    %9 = vector.broadcast %8 : f32 to vector<3x128xf32>
    %10 = arith.subf %0, %9 : vector<3x128xf32>
    %c2 = arith.constant 2 : index
    %11 = memref.load %arg2[%c2] : memref<3xf32, #tpu.memory_space<smem>>
    %12 = vector.broadcast %11 : f32 to vector<3x128xf32>
    %13 = arith.subf %0, %12 : vector<3x128xf32>
    %14 = arith.mulf %7, %10 : vector<3x128xf32>
    %15 = arith.mulf %14, %13 : vector<3x128xf32>
    %c0_3 = arith.constant 0 : index
    %c0_4 = arith.constant 0 : index
    %16 = vector.load %arg4[%c0_3, %c0_4] : memref<3x128xf32, #tpu.memory_space<vmem>>, vector<3x128xf32>
    tpu.vector_store %arg4[%c0_3, %c0_4], %15 {strides = array<i32>} : memref<3x128xf32, #tpu.memory_space<vmem>>, vector<3x128xf32>,
    return
  }
  func.func @transform_0(%arg0: i32) -> i32 {
    %c0_i32 = arith.constant 0 : i32
    %c0_i32_0 = arith.constant 0 : i32
    return %c0_i32 : i32
  }
  func.func @transform_1(%arg0: i32) -> i32 {
    %c0_i32 = arith.constant 0 : i32
    %c0_i32_0 = arith.constant 0 : i32
    return %c0_i32 : i32
  }
  func.func @transform_2(%arg0: i32) -> (i32, i32) {
    %c0_i32 = arith.constant 0 : i32
    %c0_i32_0 = arith.constant 0 : i32
    return %arg0, %c0_i32 : i32, i32
  }
  func.func @transform_3(%arg0: i32) -> (i32, i32) {
    %c0_i32 = arith.constant 0 : i32
    %c0_i32_0 = arith.constant 0 : i32
    return %arg0, %c0_i32 : i32, i32
  }
}

</mosaic_0001>

<llo_original>
// kernel: tpu_custom_call.1
$region0: #{tpu_custom_call.1}
  #allocation0 [shape = 'u32[]', space=smem, size = 0x4, offset = 0x4, fixed_abs, tag = 'smem constant byte address 0x4 - core index']
  #allocation1 [shape = 'u32[72,128]{1,0:T(1,128)}', space=vmem, size = 0x9000, scoped, tag = 'internal scratch']
  #allocation2 [shape = 'f32[1]{0:T(128)S(6)}', space=smem, size = 0x200, scoped, tag = 'scoped memory for tpu_custom_call.1']
  %s0 = inlined_call_operand.<no memory space> [shape: f32[1], index: 0, kind: input, shape index: {}]
  %s1 = inlined_call_operand.vmem [shape: f32[3], index: 1, kind: input, shape index: {}]
  %s2 = inlined_call_operand.hbm [shape: f32[3,128], index: 2, kind: input, shape index: {}]
  %s3 = inlined_call_operand.hbm [shape: f32[3,128], index: 3, kind: output, shape index: {}]
  %s4 = sld [smem:[#allocation0]]
  $region30: #{tpu_custom_call.1} parent=0
    _
  %s6 = ssub.s32 1, %s4
  %s7 = scalar_select 0, %s6, %s4
  %8 = sst [smem:[#allocation2]] %s0
  $region1: #{tpu_custom_call.1} parent=0
    #allocation3 [shape = 'u8[512]{0}', space=smem, size = 0x200, scoped, tag = 'input window, operand 1, single buffered']
    #allocation4 [shape = 's32[1]{0}', space=sflag, size = 0x4, scoped, tag = 'scoped memory for tpu_custom_call.1']
    #allocation5 [shape = 's32[1]{0}', space=sflag, size = 0x4, scoped, tag = 'scoped memory for tpu_custom_call.1']
    #allocation6 [shape = 's32[1]{0}', space=sflag, size = 0x4, scoped, tag = 'scoped memory for tpu_custom_call.1']
    #allocation7 [shape = 'u8[2048]{0}', space=vmem, size = 0x800, scoped, tag = 'input window, operand 2, single buffered']
    #allocation8 [shape = 'u8[2048]{0}', space=vmem, size = 0x800, scoped, tag = 'output window, operand 0, single buffered']
    %9 = vsyncpa [#allocation6], 0
    %10 = vsyncpa [#allocation4], 0
    %11 = vsyncpa [#allocation5], 0
    // Predicated region
    $region2: #{tpu_custom_call.1} parent=1 // pred_check
      _
    $region3: #{tpu_custom_call.1} parent=1 // pred_check_branch
      %13 = sbr.rel (0) target = $region5
    $region4: #{tpu_custom_call.1} parent=1 // pred_region
      _
    $region5: #{tpu_custom_call.1} parent=1 // pred_fallthru
      _
    // Predicated region
    $region6: #{tpu_custom_call.1} parent=1 // pred_check
      _
    $region7: #{tpu_custom_call.1} parent=1 // pred_check_branch
      %15 = sbr.rel (0) target = $region9
    $region8: #{tpu_custom_call.1} parent=1 // pred_region
      %17 = vsyncadd [#allocation6], 0
      %s19 = sshll.u32 %s1, 4
      %s20 = int_to_ptr.vmem [resolvable:$true] %s19
      %22 = dma.vmem_to_smem %s20, 16, [#allocation3], [#allocation6]
    $region9: #{tpu_custom_call.1} parent=1 // pred_fallthru
      _
    // Predicated region
    $region10: #{tpu_custom_call.1} parent=1 // pred_check
      _
    $region11: #{tpu_custom_call.1} parent=1 // pred_check_branch
      %24 = sbr.rel (0) target = $region13
    $region12: #{tpu_custom_call.1} parent=1 // pred_region
      %26 = vsyncadd [#allocation4], 0
      %s28 = sshll.u32 %s2, 4
      %s29 = int_to_ptr.hbm [resolvable:$true] %s28
      %s30 = sshll.u32 [#allocation7], 4
      %s31 = int_to_ptr.vmem [resolvable:$true] %s30
      %33 = dma.hbm_to_vmem [thread:$0]  %s29, 64, %s31, [#allocation4]
    $region13: #{tpu_custom_call.1} parent=1 // pred_fallthru
      _
    // Predicated region
    $region14: #{tpu_custom_call.1} parent=1 // pred_check
      _
    $region15: #{tpu_custom_call.1} parent=1 // pred_check_branch
      %35 = sbr.rel (0) target = $region17
    $region16: #{tpu_custom_call.1} parent=1 // pred_region
      %37 = dma.done [#allocation6], 16
    $region17: #{tpu_custom_call.1} parent=1 // pred_fallthru
      _
    // Predicated region
    $region18: #{tpu_custom_call.1} parent=1 // pred_check
      _
    $region19: #{tpu_custom_call.1} parent=1 // pred_check_branch
      %39 = sbr.rel (0) target = $region21
    $region20: #{tpu_custom_call.1} parent=1 // pred_region
      %41 = dma.done [#allocation4], 64
    $region21: #{tpu_custom_call.1} parent=1 // pred_fallthru
      _
    %42 = sfence
    %v43 = vld [vmem:[#allocation7] sm:$0x7]
    %s44 = sld [smem:[#allocation2]]
    %v45 = vstv %s44
    %v46 = vmul.f32 %v45, %v43
    %s47 = sld [smem:[#allocation3]]
    %s48 = smul.f32 %s44, %s47
    %v49 = vstv %s48
    %v50 = vsub.f32 %v46, %v49
    %s51 = sld [smem:[#allocation3 + $0x1]]
    %v52 = vstv %s51
    %v53 = vsub.f32 %v43, %v52
    %s54 = sld [smem:[#allocation3 + $0x2]]
    %v55 = vstv %s54
    %v56 = vsub.f32 %v43, %v55
    %v57 = vmul.f32 %v50, %v53
    %v58 = vmul.f32 %v57, %v56
    %59 = vst [vmem:[#allocation8] sm:$0x7] %v58
    // Predicated region
    $region22: #{tpu_custom_call.1} parent=1 // pred_check
      _
    $region23: #{tpu_custom_call.1} parent=1 // pred_check_branch
      %61 = sbr.rel (0) target = $region25
    $region24: #{tpu_custom_call.1} parent=1 // pred_region
      %63 = vsyncadd [#allocation5], 0
      %s65 = sshll.u32 [#allocation8], 4
      %s66 = int_to_ptr.vmem [resolvable:$true] %s65
      %s67 = sshll.u32 %s3, 4
      %s68 = int_to_ptr.hbm [resolvable:$true] %s67
      %70 = dma.vmem_to_hbm [thread:$0]  %s66, 64, %s68, [#allocation5]
    $region25: #{tpu_custom_call.1} parent=1 // pred_fallthru
      _
    // Predicated region
    $region26: #{tpu_custom_call.1} parent=1 // pred_check
      _
    $region27: #{tpu_custom_call.1} parent=1 // pred_check_branch
      %72 = sbr.rel (0) target = $region29
    $region28: #{tpu_custom_call.1} parent=1 // pred_region
      %74 = dma.done [#allocation5], 64
    $region29: #{tpu_custom_call.1} parent=1 // pred_fallthru
      _
    %75 = vsyncpa [#allocation4], 1
    %76 = vsyncpa [#allocation5], 1
    %77 = vsyncpa [#allocation6], 1

</llo_original>
